<compile_context>
chip_gen: v5e
topology: v5e:2x2
jax: 0.10.0
libtpu: 0.0.40
codegen_flags: <defaults>
</compile_context>

<pallas_src>
import functools

import jax
import jax.numpy as jnp
from jax.experimental import pallas as pl
from jax.experimental.pallas import tpu as pltpu


def _fused_mlp_kernel(*refs, num_layers: int, activate_final: bool,
                      mxu_dtype, precision):
    """Whole MLP in one kernel: chained (h @ W + b) [+ ReLU] on MXU/VPU.

    refs = (x_ref, w0_ref, b0_ref, ..., w{L-1}_ref, b{L-1}_ref, o_ref).
    All refs are VMEM-resident views (full arrays in the grid-less path, or a
    batch tile of x/out plus full weights in the batch-tiled path).
    """
    x_ref = refs[0]
    o_ref = refs[-1]
    p_refs = refs[1:-1]

    h = x_ref[...]
    for i in range(num_layers):
        w = p_refs[2 * i][...]
        b = p_refs[2 * i + 1][...]          # (1, Dout) -> broadcasts over batch rows
        h = jnp.dot(h.astype(mxu_dtype), w.astype(mxu_dtype),
                    preferred_element_type=jnp.float32,
                    precision=precision) + b.astype(jnp.float32)
        if (i < num_layers - 1) or activate_final:
            h = jnp.maximum(h, 0.0)          # ReLU (module default activation_fn)
    o_ref[...] = h.astype(o_ref.dtype)


def init_mlp_params(key, input_dim, layer_widths, dtype=jnp.float32):
    """Parameter init mirroring torch.nn.Linear shapes/init.

    PyTorch Linear weight is [out, in]; we store the transpose [in, out] so the
    kernel computes x @ W directly (== x @ W_pt.T + b).  Biases are stored as
    (1, out) so the kernel needs no per-call reshape.  No padding is done —
    full-array refs handle non-aligned shapes, keeping weight DMA minimal.
    """
    params = []
    prev = input_dim
    for width in layer_widths:
        key, kw, kb = jax.random.split(key, 3)
        bound = 1.0 / (prev ** 0.5)  # same uniform bound as torch.nn.Linear default init
        w = jax.random.uniform(kw, (prev, width), dtype, minval=-bound, maxval=bound)
        b = jax.random.uniform(kb, (1, width), dtype, minval=-bound, maxval=bound)
        params.append((w, b))
        prev = width
    return params


def mlp_forward(params, x, activate_final=False, *,
                block_batch=128, mxu_dtype=jnp.float32, out_dtype=None):
    """Fused MLP forward: single pallas_call, activations never round-trip HBM."""
    num_layers = len(params)
    B, Din = x.shape
    Dout = params[-1][0].shape[1]
    out_dtype = x.dtype if out_dtype is None else out_dtype

    # f32 operands -> HIGHEST precision so results match an f32 reference
    # tightly; bf16 operands (v6e/v7x throughput mode) use default precision.
    precision = (jax.lax.Precision.HIGHEST
                 if jnp.dtype(mxu_dtype) == jnp.dtype(jnp.float32) else None)

    flat_params = []
    for w, b in params:
        flat_params.append(w)
        flat_params.append(b)

    kernel = functools.partial(
        _fused_mlp_kernel, num_layers=num_layers, activate_final=activate_final,
        mxu_dtype=mxu_dtype, precision=precision)

    flops = 2 * B * sum(int(w.shape[0]) * int(w.shape[1]) for w, _ in params)
    bytes_accessed = (
        x.size * jnp.dtype(x.dtype).itemsize
        + sum(w.size * jnp.dtype(w.dtype).itemsize
              + b.size * jnp.dtype(b.dtype).itemsize for w, b in params)
        + B * Dout * jnp.dtype(out_dtype).itemsize)
    cost = pl.CostEstimate(flops=flops, transcendentals=0,
                           bytes_accessed=int(bytes_accessed))

    vmem_spec = pl.BlockSpec(memory_space=pltpu.MemorySpace.VMEM)

    if B <= block_batch:
        # Grid-less, fully VMEM-resident path (latency-optimal at toy sizes).
        return pl.pallas_call(
            kernel,
            out_shape=jax.ShapeDtypeStruct((B, Dout), out_dtype),
            in_specs=[vmem_spec] * (1 + len(flat_params)),
            out_specs=vmem_spec,
            cost_estimate=cost,
        )(x, *flat_params)

    # Batch-tiled grid: activations tiled over batch (auto double-buffered),
    # weights/biases pinned to block (0,0) so they are DMA'd once and stay
    # VMEM-resident across the whole grid.
    grid_b = pl.cdiv(B, block_batch)
    B_pad = grid_b * block_batch
    if B_pad != B:
        x = jnp.zeros((B_pad, Din), x.dtype).at[:B].set(x)

    in_specs = [pl.BlockSpec((block_batch, Din), lambda i: (i, 0))]
    for w, b in params:
        in_specs.append(pl.BlockSpec(tuple(w.shape), lambda i: (0, 0)))
        in_specs.append(pl.BlockSpec(tuple(b.shape), lambda i: (0, 0)))
    out_specs = pl.BlockSpec((block_batch, Dout), lambda i: (i, 0))

    out = pl.pallas_call(
        kernel,
        out_shape=jax.ShapeDtypeStruct((B_pad, Dout), out_dtype),
        grid=(grid_b,),
        in_specs=in_specs,
        out_specs=out_specs,
        compiler_params=pltpu.CompilerParams(
            dimension_semantics=("parallel",)),  # 2-TC sharding on v7x
        cost_estimate=cost,
    )(x, *flat_params)

    return out[:B] if B_pad != B else out


def _reference_mlp(params, x, activate_final):
    """Pure-JAX reference of the same math (HIGHEST precision f32)."""
    h = x
    for i, (w, b) in enumerate(params):
        h = jnp.dot(h, w, precision=jax.lax.Precision.HIGHEST) + b
        if i < len(params) - 1 or activate_final:
            h = jnp.maximum(h, 0.0)
    return h


if __name__ == "__main__":
    key = jax.random.PRNGKey(0)
    key, kp, kx_small, kx_big = jax.random.split(key, 4)

    input_dim = 4
    layer_widths = [32, 32, 16]  # len = #layers, last element = output dim
    activate_final = False

    params = init_mlp_params(kp, input_dim, layer_widths)
    fwd = jax.jit(functools.partial(mlp_forward, activate_final=activate_final))

    # --- small batch: grid-less, fully VMEM-resident path -------------------
    x_small = jax.random.normal(kx_small, (8, input_dim), jnp.float32)
    out_small = jax.block_until_ready(fwd(params, x_small))
    ref_small = _reference_mlp(params, x_small, activate_final)
    assert out_small.shape == (8, layer_widths[-1])
    assert jnp.allclose(out_small, ref_small, atol=1e-4, rtol=1e-4)

    # --- larger batch: batch-tiled grid, weights stay VMEM-resident ---------
    x_big = jax.random.normal(kx_big, (256, input_dim), jnp.float32)
    out_big = jax.block_until_ready(fwd(params, x_big))
    ref_big = _reference_mlp(params, x_big, activate_final)
    assert out_big.shape == (256, layer_widths[-1])
    assert jnp.allclose(out_big, ref_big, atol=1e-4, rtol=1e-4)

    print("KERNEL_OK")
</pallas_src>

<mosaic_0001>
module attributes {stable_mosaic.version = 11 : i64} {
  func.func @_fused_mlp_kernel(%arg0: memref<8x4xf32, #tpu.memory_space<vmem>>, %arg1: memref<4x32xf32, #tpu.memory_space<vmem>>, %arg2: memref<1x32xf32, #tpu.memory_space<vmem>>, %arg3: memref<32x32xf32, #tpu.memory_space<vmem>>, %arg4: memref<1x32xf32, #tpu.memory_space<vmem>>, %arg5: memref<32x16xf32, #tpu.memory_space<vmem>>, %arg6: memref<1x16xf32, #tpu.memory_space<vmem>>, %arg7: memref<8x16xf32, #tpu.memory_space<vmem>>) attributes {dimension_semantics = [], scalar_prefetch = 0 : i64, scratch_operands = 0 : i64, tpu.core_type = #tpu.core_type<tc>} {
    %c0 = arith.constant 0 : index
    %c0_0 = arith.constant 0 : index
    %0 = vector.load %arg0[%c0, %c0_0] : memref<8x4xf32, #tpu.memory_space<vmem>>, vector<8x4xf32>
    %c0_1 = arith.constant 0 : index
    %c0_2 = arith.constant 0 : index
    %1 = vector.load %arg1[%c0_1, %c0_2] : memref<4x32xf32, #tpu.memory_space<vmem>>, vector<4x32xf32>
    %c0_3 = arith.constant 0 : index
    %c0_4 = arith.constant 0 : index
    %2 = vector.load %arg2[%c0_3, %c0_4] : memref<1x32xf32, #tpu.memory_space<vmem>>, vector<1x32xf32>
    %cst = arith.constant dense<0.000000e+00> : vector<8x32xf32>
    %3 = tpu.matmul %0, %1, %cst {dimension_numbers = #tpu.dot_dimension_numbers<[1], [0], [0], [1], [0, 0, 1, 1], [], []>, precision = #tpu.contract_precision<fp32>} : vector<8x4xf32>, vector<4x32xf32>, vector<8x32xf32> -> vector<8x32xf32>
    %4 = vector.broadcast %2 : vector<1x32xf32> to vector<8x32xf32>
    %5 = arith.addf %3, %4 : vector<8x32xf32>
    %cst_5 = arith.constant 0.000000e+00 : f32
    %6 = vector.broadcast %cst_5 : f32 to vector<8x32xf32>
    %7 = arith.maximumf %5, %6 : vector<8x32xf32>
    %c0_6 = arith.constant 0 : index
    %c0_7 = arith.constant 0 : index
    %8 = vector.load %arg3[%c0_6, %c0_7] : memref<32x32xf32, #tpu.memory_space<vmem>>, vector<32x32xf32>
    %c0_8 = arith.constant 0 : index
    %c0_9 = arith.constant 0 : index
    %9 = vector.load %arg4[%c0_8, %c0_9] : memref<1x32xf32, #tpu.memory_space<vmem>>, vector<1x32xf32>
    %cst_10 = arith.constant dense<0.000000e+00> : vector<8x32xf32>
    %10 = tpu.matmul %7, %8, %cst_10 {dimension_numbers = #tpu.dot_dimension_numbers<[1], [0], [0], [1], [0, 0, 1, 1], [], []>, precision = #tpu.contract_precision<fp32>} : vector<8x32xf32>, vector<32x32xf32>, vector<8x32xf32> -> vector<8x32xf32>
    %11 = vector.broadcast %9 : vector<1x32xf32> to vector<8x32xf32>
    %12 = arith.addf %10, %11 : vector<8x32xf32>
    %cst_11 = arith.constant 0.000000e+00 : f32
    %13 = vector.broadcast %cst_11 : f32 to vector<8x32xf32>
    %14 = arith.maximumf %12, %13 : vector<8x32xf32>
    %c0_12 = arith.constant 0 : index
    %c0_13 = arith.constant 0 : index
    %15 = vector.load %arg5[%c0_12, %c0_13] : memref<32x16xf32, #tpu.memory_space<vmem>>, vector<32x16xf32>
    %c0_14 = arith.constant 0 : index
    %c0_15 = arith.constant 0 : index
    %16 = vector.load %arg6[%c0_14, %c0_15] : memref<1x16xf32, #tpu.memory_space<vmem>>, vector<1x16xf32>
    %cst_16 = arith.constant dense<0.000000e+00> : vector<8x16xf32>
    %17 = tpu.matmul %14, %15, %cst_16 {dimension_numbers = #tpu.dot_dimension_numbers<[1], [0], [0], [1], [0, 0, 1, 1], [], []>, precision = #tpu.contract_precision<fp32>} : vector<8x32xf32>, vector<32x16xf32>, vector<8x16xf32> -> vector<8x16xf32>
    %18 = vector.broadcast %16 : vector<1x16xf32> to vector<8x16xf32>
    %19 = arith.addf %17, %18 : vector<8x16xf32>
    %c0_17 = arith.constant 0 : index
    %c0_18 = arith.constant 0 : index
    %20 = vector.load %arg7[%c0_17, %c0_18] : memref<8x16xf32, #tpu.memory_space<vmem>>, vector<8x16xf32>
    tpu.vector_store %arg7[%c0_17, %c0_18], %19 {strides = array<i32>} : memref<8x16xf32, #tpu.memory_space<vmem>>, vector<8x16xf32>,
    return
  }
}

</mosaic_0001>

<llo_original>
// kernel: mlp_forward.1
$region0: #{mlp_forward.1}
  #allocation0 [shape = 'u32[]', space=smem, size = 0x4, offset = 0x4, fixed_abs, tag = 'smem constant byte address 0x4 - core index']
  #allocation1 [shape = 'u32[72,128]{1,0:T(1,128)}', space=vmem, size = 0x9000, scoped, tag = 'internal scratch']
  %s0 = inlined_call_operand.vmem [shape: f32[8,4], index: 0, kind: input, shape index: {}]
  %s1 = inlined_call_operand.vmem [shape: f32[4,32], index: 1, kind: input, shape index: {}]
  %s2 = inlined_call_operand.vmem [shape: f32[1,32], index: 2, kind: input, shape index: {}]
  %s3 = inlined_call_operand.vmem [shape: f32[32,32], index: 3, kind: input, shape index: {}]
  %s4 = inlined_call_operand.vmem [shape: f32[1,32], index: 4, kind: input, shape index: {}]
  %s5 = inlined_call_operand.vmem [shape: f32[32,16], index: 5, kind: input, shape index: {}]
  %s6 = inlined_call_operand.vmem [shape: f32[1,16], index: 6, kind: input, shape index: {}]
  %s7 = inlined_call_operand.hbm [shape: f32[8,16], index: 7, kind: output, shape index: {}]
  %s8 = sld [smem:[#allocation0]]
  $region38: #{mlp_forward.1} parent=0
    _
  %s10 = ssub.s32 1, %s8
  %s11 = scalar_select 0, %s10, %s8
  $region1: #{mlp_forward.1} parent=0
    #allocation2 [shape = 'u8[4096]{0}', space=vmem, size = 0x1000, scoped, tag = 'output window, operand 0, single buffered']
    #allocation3 [shape = 's32[1]{0}', space=sflag, size = 0x4, scoped, tag = 'scoped memory for mlp_forward.1']
    %12 = vsyncpa [#allocation3], 0
    // Predicated region
    $region2: #{mlp_forward.1} parent=1 // pred_check
      _
    $region3: #{mlp_forward.1} parent=1 // pred_check_branch
      %14 = sbr.rel (0) target = $region5
    $region4: #{mlp_forward.1} parent=1 // pred_region
      _
    $region5: #{mlp_forward.1} parent=1 // pred_fallthru
      _
    // Predicated region
    $region6: #{mlp_forward.1} parent=1 // pred_check
      _
    $region7: #{mlp_forward.1} parent=1 // pred_check_branch
      %16 = sbr.rel (0) target = $region9
    $region8: #{mlp_forward.1} parent=1 // pred_region
      _
    $region9: #{mlp_forward.1} parent=1 // pred_fallthru
      _
    // Predicated region
    $region10: #{mlp_forward.1} parent=1 // pred_check
      _
    $region11: #{mlp_forward.1} parent=1 // pred_check_branch
      %18 = sbr.rel (0) target = $region13
    $region12: #{mlp_forward.1} parent=1 // pred_region
      _
    $region13: #{mlp_forward.1} parent=1 // pred_fallthru
      _
    // Predicated region
    $region14: #{mlp_forward.1} parent=1 // pred_check
      _
    $region15: #{mlp_forward.1} parent=1 // pred_check_branch
      %20 = sbr.rel (0) target = $region17
    $region16: #{mlp_forward.1} parent=1 // pred_region
      _
    $region17: #{mlp_forward.1} parent=1 // pred_fallthru
      _
    // Predicated region
    $region18: #{mlp_forward.1} parent=1 // pred_check
      _
    $region19: #{mlp_forward.1} parent=1 // pred_check_branch
      %22 = sbr.rel (0) target = $region21
    $region20: #{mlp_forward.1} parent=1 // pred_region
      _
    $region21: #{mlp_forward.1} parent=1 // pred_fallthru
      _
    // Predicated region
    $region22: #{mlp_forward.1} parent=1 // pred_check
      _
    $region23: #{mlp_forward.1} parent=1 // pred_check_branch
      %24 = sbr.rel (0) target = $region25
    $region24: #{mlp_forward.1} parent=1 // pred_region
      _
    $region25: #{mlp_forward.1} parent=1 // pred_fallthru
      _
    // Predicated region
    $region26: #{mlp_forward.1} parent=1 // pred_check
      _
    $region27: #{mlp_forward.1} parent=1 // pred_check_branch
      %26 = sbr.rel (0) target = $region29
    $region28: #{mlp_forward.1} parent=1 // pred_region
      _
    $region29: #{mlp_forward.1} parent=1 // pred_fallthru
      _
    %v27 = vld [vmem:[%s0] sm:$0xff]
    %v28 = vld [vmem:[%s1] sm:$0xf]
    %v29 = vld [vmem:[%s2] sm:$0x1]
    %v31 = vperm.slane %v29, 0
    %vm33 = vcmask 31744
    %v35 = vsel %vm33, %v27, 0
    %vm37 = vcmask 1043456
    %v39 = vsel %vm37, %v28, 0
    %41 = vmatpush.msra.mxu0 0.0
    %42 = vmatpush.msra.mxu0 0.0
    %43 = vmatpush.msra.mxu0 0.0
    %44 = vmatpush.msra.mxu0 0.0
    %45 = vmatpush.msra.mxu0 0.0
    %46 = vmatpush.msra.mxu0 0.0
    %47 = vmatpush.msra.mxu0 0.0
    %48 = vmatpush.msra.mxu0 0.0
    %49 = vmatpush.msra.mxu0 0.0
    %50 = vmatpush.msra.mxu0 0.0
    %51 = vmatpush.msra.mxu0 0.0
    %52 = vmatpush.msra.mxu0 0.0
    %53 = vmatpush.msra.mxu0 0.0
    %54 = vmatpush.msra.mxu0 0.0
    %55 = vmatpush.msra.mxu0 0.0
    %v56 = vand.u32 %v39, 4294901760
    %57 = vmatpush.msra.mxu0 %v56
    %v58 = vand.u32 %v35, 4294901760
    %v59 = vsub.f32 %v35, %v58
    %v60 = vand.u32 %v59, 4294901760
    %v61 = vsub.f32 %v59, %v60
    %v62 = vand.u32 %v61, 4294901760
    %63 = vmatmul.f32.gmra.mxu0 %v62
    %v64 = vpop.f32.mrf.mxu0
    %v65 = vadd.f32 %v31, %v64
    %66 = vdwg.mxu0
    %67 = vmatpush.msra.mxu0 0.0
    %68 = vmatpush.msra.mxu0 0.0
    %69 = vmatpush.msra.mxu0 0.0
    %70 = vmatpush.msra.mxu0 0.0
    %71 = vmatpush.msra.mxu0 0.0
    %72 = vmatpush.msra.mxu0 0.0
    %73 = vmatpush.msra.mxu0 0.0
    %74 = vmatpush.msra.mxu0 0.0
    %75 = vmatpush.msra.mxu0 0.0
    %76 = vmatpush.msra.mxu0 0.0
    %77 = vmatpush.msra.mxu0 0.0
    %78 = vmatpush.msra.mxu0 0.0
    %79 = vmatpush.msra.mxu0 0.0
    %80 = vmatpush.msra.mxu0 0.0
    %81 = vmatpush.msra.mxu0 0.0
    %v82 = vand.u32 %v39, 4294901760
    %v83 = vsub.f32 %v39, %v82
    %v84 = vand.u32 %v83, 4294901760
    %v85 = vsub.f32 %v83, %v84
    %v86 = vand.u32 %v85, 4294901760
    %87 = vmatpush.msra.mxu0 %v86
    %v88 = vand.u32 %v35, 4294901760
    %89 = vmatmul.f32.gmra.mxu0 %v88
    %v90 = vpop.f32.mrf.mxu0
    %v91 = vadd.f32 %v65, %v90
    %92 = vdwg.mxu0
    %93 = vmatpush.msra.mxu0 0.0
    %94 = vmatpush.msra.mxu0 0.0
    %95 = vmatpush.msra.mxu0 0.0
    %96 = vmatpush.msra.mxu0 0.0
    %97 = vmatpush.msra.mxu0 0.0
    %98 = vmatpush.msra.mxu0 0.0
    %99 = vmatpush.msra.mxu0 0.0
    %100 = vmatpush.msra.mxu0 0.0
    %101 = vmatpush.msra.mxu0 0.0
    %102 = vmatpush.msra.mxu0 0.0
    %103 = vmatpush.msra.mxu0 0.0
    %104 = vmatpush.msra.mxu0 0.0
    %105 = vmatpush.msra.mxu0 0.0
    %106 = vmatpush.msra.mxu0 0.0
    %107 = vmatpush.msra.mxu0 0.0
    %v108 = vand.u32 %v39, 4294901760
    %v109 = vsub.f32 %v39, %v108
    %110 = vmatpush.msra.mxu0 %v109
    %v111 = vand.u32 %v35, 4294901760
    %v112 = vsub.f32 %v35, %v111
    %113 = vmatmul.f32.gmra.mxu0 %v112
    %v114 = vpop.f32.mrf.mxu0
    %v115 = vadd.f32 %v91, %v114
    %116 = vdwg.mxu0
    %117 = vmatpush.msra.mxu0 0.0
    %118 = vmatpush.msra.mxu0 0.0
    %119 = vmatpush.msra.mxu0 0.0
    %120 = vmatpush.msra.mxu0 0.0
    %121 = vmatpush.msra.mxu0 0.0
    %122 = vmatpush.msra.mxu0 0.0
    %123 = vmatpush.msra.mxu0 0.0
    %124 = vmatpush.msra.mxu0 0.0
    %125 = vmatpush.msra.mxu0 0.0
    %126 = vmatpush.msra.mxu0 0.0
    %127 = vmatpush.msra.mxu0 0.0
    %128 = vmatpush.msra.mxu0 0.0
    %129 = vmatpush.msra.mxu0 0.0
    %130 = vmatpush.msra.mxu0 0.0
    %131 = vmatpush.msra.mxu0 0.0
    %v132 = vand.u32 %v39, 4294901760
    %133 = vmatpush.msra.mxu0 %v132
    %v134 = vand.u32 %v35, 4294901760
    %v135 = vsub.f32 %v35, %v134
    %v136 = vand.u32 %v135, 4294901760
    %137 = vmatmul.f32.gmra.mxu0 %v136
    %v138 = vpop.f32.mrf.mxu0
    %v139 = vadd.f32 %v115, %v138
    %140 = vdwg.mxu0
    %141 = vmatpush.msra.mxu0 0.0
    %142 = vmatpush.msra.mxu0 0.0
    %143 = vmatpush.msra.mxu0 0.0
    %144 = vmatpush.msra.mxu0 0.0
    %145 = vmatpush.msra.mxu0 0.0
    %146 = vmatpush.msra.mxu0 0.0
    %147 = vmatpush.msra.mxu0 0.0
    %148 = vmatpush.msra.mxu0 0.0
    %149 = vmatpush.msra.mxu0 0.0
    %150 = vmatpush.msra.mxu0 0.0
    %151 = vmatpush.msra.mxu0 0.0
    %152 = vmatpush.msra.mxu0 0.0
    %153 = vmatpush.msra.mxu0 0.0
    %154 = vmatpush.msra.mxu0 0.0
    %155 = vmatpush.msra.mxu0 0.0
    %v156 = vand.u32 %v39, 4294901760
    %v157 = vsub.f32 %v39, %v156
    %v158 = vand.u32 %v157, 4294901760
    %159 = vmatpush.msra.mxu0 %v158
    %v160 = vand.u32 %v35, 4294901760
    %161 = vmatmul.f32.gmra.mxu0 %v160
    %v162 = vpop.f32.mrf.mxu0
    %v163 = vadd.f32 %v139, %v162
    %164 = vdwg.mxu0
    %165 = vmatpush.msra.mxu0 0.0
    %166 = vmatpush.msra.mxu0 0.0
    %167 = vmatpush.msra.mxu0 0.0
    %168 = vmatpush.msra.mxu0 0.0
    %169 = vmatpush.msra.mxu0 0.0
    %170 = vmatpush.msra.mxu0 0.0
    %171 = vmatpush.msra.mxu0 0.0
    %172 = vmatpush.msra.mxu0 0.0
    %173 = vmatpush.msra.mxu0 0.0
    %174 = vmatpush.msra.mxu0 0.0
    %175 = vmatpush.msra.mxu0 0.0
    %176 = vmatpush.msra.mxu0 0.0
    %177 = vmatpush.msra.mxu0 0.0
    %178 = vmatpush.msra.mxu0 0.0
    %179 = vmatpush.msra.mxu0 0.0
    %v180 = vand.u32 %v39, 4294901760
    %181 = vmatpush.msra.mxu0 %v180
    %v182 = vand.u32 %v35, 4294901760
    %183 = vmatmul.f32.gmra.mxu0 %v182
    %v184 = vpop.f32.mrf.mxu0
    %v185 = vadd.f32 %v163, %v184
    %186 = vdwg.mxu0
    %v187 = vmax.f32 %v185, 0.0
    %v188 = vld [vmem:[%s3] sm:$0xff]
    %v189 = vld [vmem:[%s3 + $0x8] sm:$0xff]
    %v190 = vld [vmem:[%s3 + $0x10] sm:$0xff]
    %v191 = vld [vmem:[%s3 + $0x18] sm:$0xff]
    %v192 = vld [vmem:[%s4] sm:$0x1]
    %v194 = vperm.slane %v192, 0
    %vm196 = vcmask 261120
    %v198 = vsel %vm196, %v187, 0
    %200 = vmatpush.msra.mxu0 0.0
    %201 = vmatpush.msra.mxu0 0.0
    %202 = vmatpush.msra.mxu0 0.0
    %203 = vmatpush.msra.mxu0 0.0
    %204 = vmatpush.msra.mxu0 0.0
    %205 = vmatpush.msra.mxu0 0.0
    %206 = vmatpush.msra.mxu0 0.0
    %207 = vmatpush.msra.mxu0 0.0
    %208 = vmatpush.msra.mxu0 0.0
    %209 = vmatpush.msra.mxu0 0.0
    %210 = vmatpush.msra.mxu0 0.0
    %211 = vmatpush.msra.mxu0 0.0
    %v212 = vand.u32 %v191, 4294901760
    %213 = vmatpush.msra.mxu0 %v212
    %v214 = vand.u32 %v190, 4294901760
    %215 = vmatpush.msra.mxu0 %v214
    %v216 = vand.u32 %v189, 4294901760
    %217 = vmatpush.msra.mxu0 %v216
    %v218 = vand.u32 %v188, 4294901760
    %219 = vmatpush.msra.mxu0 %v218
    %v220 = vand.u32 %v198, 4294901760
    %v221 = vsub.f32 %v198, %v220
    %v222 = vand.u32 %v221, 4294901760
    %v223 = vsub.f32 %v221, %v222
    %v224 = vand.u32 %v223, 4294901760
    %225 = vmatmul.f32.gmra.mxu0 %v224
    %v226 = vpop.f32.mrf.mxu0
    %v227 = vadd.f32 %v194, %v226
    %228 = vdwg.mxu0
    %229 = vmatpush.msra.mxu0 0.0
    %230 = vmatpush.msra.mxu0 0.0
    %231 = vmatpush.msra.mxu0 0.0
    %232 = vmatpush.msra.mxu0 0.0
    %233 = vmatpush.msra.mxu0 0.0
    %234 = vmatpush.msra.mxu0 0.0
    %235 = vmatpush.msra.mxu0 0.0
    %236 = vmatpush.msra.mxu0 0.0
    %237 = vmatpush.msra.mxu0 0.0
    %238 = vmatpush.msra.mxu0 0.0
    %239 = vmatpush.msra.mxu0 0.0
    %240 = vmatpush.msra.mxu0 0.0
    %v241 = vand.u32 %v191, 4294901760
    %v242 = vsub.f32 %v191, %v241
    %v243 = vand.u32 %v242, 4294901760
    %v244 = vsub.f32 %v242, %v243
    %v245 = vand.u32 %v244, 4294901760
    %246 = vmatpush.msra.mxu0 %v245
    %v247 = vand.u32 %v190, 4294901760
    %v248 = vsub.f32 %v190, %v247
    %v249 = vand.u32 %v248, 4294901760
    %v250 = vsub.f32 %v248, %v249
    %v251 = vand.u32 %v250, 4294901760
    %252 = vmatpush.msra.mxu0 %v251
    %v253 = vand.u32 %v189, 4294901760
    %v254 = vsub.f32 %v189, %v253
    %v255 = vand.u32 %v254, 4294901760
    %v256 = vsub.f32 %v254, %v255
    %v257 = vand.u32 %v256, 4294901760
    %258 = vmatpush.msra.mxu0 %v257
    %v259 = vand.u32 %v188, 4294901760
    %v260 = vsub.f32 %v188, %v259
    %v261 = vand.u32 %v260, 4294901760
    %v262 = vsub.f32 %v260, %v261
    %v263 = vand.u32 %v262, 4294901760
    %264 = vmatpush.msra.mxu0 %v263
    %v265 = vand.u32 %v198, 4294901760
    %266 = vmatmul.f32.gmra.mxu0 %v265
    %v267 = vpop.f32.mrf.mxu0
    %v268 = vadd.f32 %v227, %v267
    %269 = vdwg.mxu0
    %270 = vmatpush.msra.mxu0 0.0
    %271 = vmatpush.msra.mxu0 0.0
    %272 = vmatpush.msra.mxu0 0.0
    %273 = vmatpush.msra.mxu0 0.0
    %274 = vmatpush.msra.mxu0 0.0
    %275 = vmatpush.msra.mxu0 0.0
    %276 = vmatpush.msra.mxu0 0.0
    %277 = vmatpush.msra.mxu0 0.0
    %278 = vmatpush.msra.mxu0 0.0
    %279 = vmatpush.msra.mxu0 0.0
    %280 = vmatpush.msra.mxu0 0.0
    %281 = vmatpush.msra.mxu0 0.0
    %v282 = vand.u32 %v191, 4294901760
    %v283 = vsub.f32 %v191, %v282
    %284 = vmatpush.msra.mxu0 %v283
    %v285 = vand.u32 %v190, 4294901760
    %v286 = vsub.f32 %v190, %v285
    %287 = vmatpush.msra.mxu0 %v286
    %v288 = vand.u32 %v189, 4294901760
    %v289 = vsub.f32 %v189, %v288
    %290 = vmatpush.msra.mxu0 %v289
    %v291 = vand.u32 %v188, 4294901760
    %v292 = vsub.f32 %v188, %v291
    %293 = vmatpush.msra.mxu0 %v292
    %v294 = vand.u32 %v198, 4294901760
    %v295 = vsub.f32 %v198, %v294
    %296 = vmatmul.f32.gmra.mxu0 %v295
    %v297 = vpop.f32.mrf.mxu0
    %v298 = vadd.f32 %v268, %v297
    %299 = vdwg.mxu0
    %300 = vmatpush.msra.mxu0 0.0
    %301 = vmatpush.msra.mxu0 0.0
    %302 = vmatpush.msra.mxu0 0.0
    %303 = vmatpush.msra.mxu0 0.0
    %304 = vmatpush.msra.mxu0 0.0
    %305 = vmatpush.msra.mxu0 0.0
    %306 = vmatpush.msra.mxu0 0.0
    %307 = vmatpush.msra.mxu0 0.0
    %308 = vmatpush.msra.mxu0 0.0
    %309 = vmatpush.msra.mxu0 0.0
    %310 = vmatpush.msra.mxu0 0.0
    %311 = vmatpush.msra.mxu0 0.0
    %v312 = vand.u32 %v191, 4294901760
    %313 = vmatpush.msra.mxu0 %v312
    %v314 = vand.u32 %v190, 4294901760
    %315 = vmatpush.msra.mxu0 %v314
    %v316 = vand.u32 %v189, 4294901760
    %317 = vmatpush.msra.mxu0 %v316
    %v318 = vand.u32 %v188, 4294901760
    %319 = vmatpush.msra.mxu0 %v318
    %v320 = vand.u32 %v198, 4294901760
    %v321 = vsub.f32 %v198, %v320
    %v322 = vand.u32 %v321, 4294901760
    %323 = vmatmul.f32.gmra.mxu0 %v322
    %v324 = vpop.f32.mrf.mxu0
    %v325 = vadd.f32 %v298, %v324
    %326 = vdwg.mxu0
    %327 = vmatpush.msra.mxu0 0.0
    %328 = vmatpush.msra.mxu0 0.0
    %329 = vmatpush.msra.mxu0 0.0
    %330 = vmatpush.msra.mxu0 0.0
    %331 = vmatpush.msra.mxu0 0.0
    %332 = vmatpush.msra.mxu0 0.0
    %333 = vmatpush.msra.mxu0 0.0
    %334 = vmatpush.msra.mxu0 0.0
    %335 = vmatpush.msra.mxu0 0.0
    %336 = vmatpush.msra.mxu0 0.0
    %337 = vmatpush.msra.mxu0 0.0
    %338 = vmatpush.msra.mxu0 0.0
    %v339 = vand.u32 %v191, 4294901760
    %v340 = vsub.f32 %v191, %v339
    %v341 = vand.u32 %v340, 4294901760
    %342 = vmatpush.msra.mxu0 %v341
    %v343 = vand.u32 %v190, 4294901760
    %v344 = vsub.f32 %v190, %v343
    %v345 = vand.u32 %v344, 4294901760
    %346 = vmatpush.msra.mxu0 %v345
    %v347 = vand.u32 %v189, 4294901760
    %v348 = vsub.f32 %v189, %v347
    %v349 = vand.u32 %v348, 4294901760
    %350 = vmatpush.msra.mxu0 %v349
    %v351 = vand.u32 %v188, 4294901760
    %v352 = vsub.f32 %v188, %v351
    %v353 = vand.u32 %v352, 4294901760
    %354 = vmatpush.msra.mxu0 %v353
    %v355 = vand.u32 %v198, 4294901760
    %356 = vmatmul.f32.gmra.mxu0 %v355
    %v357 = vpop.f32.mrf.mxu0
    %v358 = vadd.f32 %v325, %v357
    %359 = vdwg.mxu0
    %360 = vmatpush.msra.mxu0 0.0
    %361 = vmatpush.msra.mxu0 0.0
    %362 = vmatpush.msra.mxu0 0.0
    %363 = vmatpush.msra.mxu0 0.0
    %364 = vmatpush.msra.mxu0 0.0
    %365 = vmatpush.msra.mxu0 0.0
    %366 = vmatpush.msra.mxu0 0.0
    %367 = vmatpush.msra.mxu0 0.0
    %368 = vmatpush.msra.mxu0 0.0
    %369 = vmatpush.msra.mxu0 0.0
    %370 = vmatpush.msra.mxu0 0.0
    %371 = vmatpush.msra.mxu0 0.0
    %v372 = vand.u32 %v191, 4294901760
    %373 = vmatpush.msra.mxu0 %v372
    %v374 = vand.u32 %v190, 4294901760
    %375 = vmatpush.msra.mxu0 %v374
    %v376 = vand.u32 %v189, 4294901760
    %377 = vmatpush.msra.mxu0 %v376
    %v378 = vand.u32 %v188, 4294901760
    %379 = vmatpush.msra.mxu0 %v378
    %v380 = vand.u32 %v198, 4294901760
    %381 = vmatmul.f32.gmra.mxu0 %v380
    %v382 = vpop.f32.mrf.mxu0
    %v383 = vadd.f32 %v358, %v382
    %384 = vdwg.mxu0
    %v385 = vmax.f32 %v383, 0.0
    %v386 = vld [vmem:[%s5] sm:$0xff]
    %v387 = vld [vmem:[%s5 + $0x8] sm:$0xff]
    %v388 = vld [vmem:[%s5 + $0x10] sm:$0xff]
    %v389 = vld [vmem:[%s5 + $0x18] sm:$0xff]
    %v390 = vld [vmem:[%s6] sm:$0x1]
    %v392 = vperm.slane %v390, 0
    %v395 = vsel %vm196, %v385, 0
    %397 = vmatpush.msra.mxu0 0.0
    %398 = vmatpush.msra.mxu0 0.0
    %399 = vmatpush.msra.mxu0 0.0
    %400 = vmatpush.msra.mxu0 0.0
    %401 = vmatpush.msra.mxu0 0.0
    %402 = vmatpush.msra.mxu0 0.0
    %403 = vmatpush.msra.mxu0 0.0
    %404 = vmatpush.msra.mxu0 0.0
    %405 = vmatpush.msra.mxu0 0.0
    %406 = vmatpush.msra.mxu0 0.0
    %407 = vmatpush.msra.mxu0 0.0
    %408 = vmatpush.msra.mxu0 0.0
    %v409 = vand.u32 %v389, 4294901760
    %410 = vmatpush.msra.mxu0 %v409
    %v411 = vand.u32 %v388, 4294901760
    %412 = vmatpush.msra.mxu0 %v411
    %v413 = vand.u32 %v387, 4294901760
    %414 = vmatpush.msra.mxu0 %v413
    %v415 = vand.u32 %v386, 4294901760
    %416 = vmatpush.msra.mxu0 %v415
    %v417 = vand.u32 %v395, 4294901760
    %v418 = vsub.f32 %v395, %v417
    %v419 = vand.u32 %v418, 4294901760
    %v420 = vsub.f32 %v418, %v419
    %v421 = vand.u32 %v420, 4294901760
    %422 = vmatmul.f32.gmra.mxu0 %v421
    %v423 = vpop.f32.mrf.mxu0
    %v424 = vadd.f32 %v392, %v423
    %425 = vdwg.mxu0
    %426 = vmatpush.msra.mxu0 0.0
    %427 = vmatpush.msra.mxu0 0.0
    %428 = vmatpush.msra.mxu0 0.0
    %429 = vmatpush.msra.mxu0 0.0
    %430 = vmatpush.msra.mxu0 0.0
    %431 = vmatpush.msra.mxu0 0.0
    %432 = vmatpush.msra.mxu0 0.0
    %433 = vmatpush.msra.mxu0 0.0
    %434 = vmatpush.msra.mxu0 0.0
    %435 = vmatpush.msra.mxu0 0.0
    %436 = vmatpush.msra.mxu0 0.0
    %437 = vmatpush.msra.mxu0 0.0
    %v438 = vand.u32 %v389, 4294901760
    %v439 = vsub.f32 %v389, %v438
    %v440 = vand.u32 %v439, 4294901760
    %v441 = vsub.f32 %v439, %v440
    %v442 = vand.u32 %v441, 4294901760
    %443 = vmatpush.msra.mxu0 %v442
    %v444 = vand.u32 %v388, 4294901760
    %v445 = vsub.f32 %v388, %v444
    %v446 = vand.u32 %v445, 4294901760
    %v447 = vsub.f32 %v445, %v446
    %v448 = vand.u32 %v447, 4294901760
    %449 = vmatpush.msra.mxu0 %v448
    %v450 = vand.u32 %v387, 4294901760
    %v451 = vsub.f32 %v387, %v450
    %v452 = vand.u32 %v451, 4294901760
    %v453 = vsub.f32 %v451, %v452
    %v454 = vand.u32 %v453, 4294901760
    %455 = vmatpush.msra.mxu0 %v454
    %v456 = vand.u32 %v386, 4294901760
    %v457 = vsub.f32 %v386, %v456
    %v458 = vand.u32 %v457, 4294901760
    %v459 = vsub.f32 %v457, %v458
    %v460 = vand.u32 %v459, 4294901760
    %461 = vmatpush.msra.mxu0 %v460
    %v462 = vand.u32 %v395, 4294901760
    %463 = vmatmul.f32.gmra.mxu0 %v462
    %v464 = vpop.f32.mrf.mxu0
    %v465 = vadd.f32 %v424, %v464
    %466 = vdwg.mxu0
    %467 = vmatpush.msra.mxu0 0.0
    %468 = vmatpush.msra.mxu0 0.0
    %469 = vmatpush.msra.mxu0 0.0
    %470 = vmatpush.msra.mxu0 0.0
    %471 = vmatpush.msra.mxu0 0.0
    %472 = vmatpush.msra.mxu0 0.0
    %473 = vmatpush.msra.mxu0 0.0
    %474 = vmatpush.msra.mxu0 0.0
    %475 = vmatpush.msra.mxu0 0.0
    %476 = vmatpush.msra.mxu0 0.0
    %477 = vmatpush.msra.mxu0 0.0
    %478 = vmatpush.msra.mxu0 0.0
    %v479 = vand.u32 %v389, 4294901760
    %v480 = vsub.f32 %v389, %v479
    %481 = vmatpush.msra.mxu0 %v480
    %v482 = vand.u32 %v388, 4294901760
    %v483 = vsub.f32 %v388, %v482
    %484 = vmatpush.msra.mxu0 %v483
    %v485 = vand.u32 %v387, 4294901760
    %v486 = vsub.f32 %v387, %v485
    %487 = vmatpush.msra.mxu0 %v486
    %v488 = vand.u32 %v386, 4294901760
    %v489 = vsub.f32 %v386, %v488
    %490 = vmatpush.msra.mxu0 %v489
    %v491 = vand.u32 %v395, 4294901760
    %v492 = vsub.f32 %v395, %v491
    %493 = vmatmul.f32.gmra.mxu0 %v492
    %v494 = vpop.f32.mrf.mxu0
    %v495 = vadd.f32 %v465, %v494
    %496 = vdwg.mxu0
    %497 = vmatpush.msra.mxu0 0.0
    %498 = vmatpush.msra.mxu0 0.0
    %499 = vmatpush.msra.mxu0 0.0
    %500 = vmatpush.msra.mxu0 0.0
    %501 = vmatpush.msra.mxu0 0.0
    %502 = vmatpush.msra.mxu0 0.0
    %503 = vmatpush.msra.mxu0 0.0
    %504 = vmatpush.msra.mxu0 0.0
    %505 = vmatpush.msra.mxu0 0.0
    %506 = vmatpush.msra.mxu0 0.0
    %507 = vmatpush.msra.mxu0 0.0
    %508 = vmatpush.msra.mxu0 0.0
    %v509 = vand.u32 %v389, 4294901760
    %510 = vmatpush.msra.mxu0 %v509
    %v511 = vand.u32 %v388, 4294901760
    %512 = vmatpush.msra.mxu0 %v511
    %v513 = vand.u32 %v387, 4294901760
    %514 = vmatpush.msra.mxu0 %v513
    %v515 = vand.u32 %v386, 4294901760
    %516 = vmatpush.msra.mxu0 %v515
    %v517 = vand.u32 %v395, 4294901760
    %v518 = vsub.f32 %v395, %v517
    %v519 = vand.u32 %v518, 4294901760
    %520 = vmatmul.f32.gmra.mxu0 %v519
    %v521 = vpop.f32.mrf.mxu0
    %v522 = vadd.f32 %v495, %v521
    %523 = vdwg.mxu0
    %524 = vmatpush.msra.mxu0 0.0
    %525 = vmatpush.msra.mxu0 0.0
    %526 = vmatpush.msra.mxu0 0.0
    %527 = vmatpush.msra.mxu0 0.0
    %528 = vmatpush.msra.mxu0 0.0
    %529 = vmatpush.msra.mxu0 0.0
    %530 = vmatpush.msra.mxu0 0.0
    %531 = vmatpush.msra.mxu0 0.0
    %532 = vmatpush.msra.mxu0 0.0
    %533 = vmatpush.msra.mxu0 0.0
    %534 = vmatpush.msra.mxu0 0.0
    %535 = vmatpush.msra.mxu0 0.0
    %v536 = vand.u32 %v389, 4294901760
    %v537 = vsub.f32 %v389, %v536
    %v538 = vand.u32 %v537, 4294901760
    %539 = vmatpush.msra.mxu0 %v538
    %v540 = vand.u32 %v388, 4294901760
    %v541 = vsub.f32 %v388, %v540
    %v542 = vand.u32 %v541, 4294901760
    %543 = vmatpush.msra.mxu0 %v542
    %v544 = vand.u32 %v387, 4294901760
    %v545 = vsub.f32 %v387, %v544
    %v546 = vand.u32 %v545, 4294901760
    %547 = vmatpush.msra.mxu0 %v546
    %v548 = vand.u32 %v386, 4294901760
    %v549 = vsub.f32 %v386, %v548
    %v550 = vand.u32 %v549, 4294901760
    %551 = vmatpush.msra.mxu0 %v550
    %v552 = vand.u32 %v395, 4294901760
    %553 = vmatmul.f32.gmra.mxu0 %v552
    %v554 = vpop.f32.mrf.mxu0
    %v555 = vadd.f32 %v522, %v554
    %556 = vdwg.mxu0
    %557 = vmatpush.msra.mxu0 0.0
    %558 = vmatpush.msra.mxu0 0.0
    %559 = vmatpush.msra.mxu0 0.0
    %560 = vmatpush.msra.mxu0 0.0
    %561 = vmatpush.msra.mxu0 0.0
    %562 = vmatpush.msra.mxu0 0.0
    %563 = vmatpush.msra.mxu0 0.0
    %564 = vmatpush.msra.mxu0 0.0
    %565 = vmatpush.msra.mxu0 0.0
    %566 = vmatpush.msra.mxu0 0.0
    %567 = vmatpush.msra.mxu0 0.0
    %568 = vmatpush.msra.mxu0 0.0
    %v569 = vand.u32 %v389, 4294901760
    %570 = vmatpush.msra.mxu0 %v569
    %v571 = vand.u32 %v388, 4294901760
    %572 = vmatpush.msra.mxu0 %v571
    %v573 = vand.u32 %v387, 4294901760
    %574 = vmatpush.msra.mxu0 %v573
    %v575 = vand.u32 %v386, 4294901760
    %576 = vmatpush.msra.mxu0 %v575
    %v577 = vand.u32 %v395, 4294901760
    %578 = vmatmul.f32.gmra.mxu0 %v577
    %v579 = vpop.f32.mrf.mxu0
    %v580 = vadd.f32 %v555, %v579
    %581 = vdwg.mxu0
    %vm582 = vcmask 130048
    %583 = vst.msk [vmem:[#allocation2] sm:$0xff] %vm582, %v580
    // Predicated region
    $region30: #{mlp_forward.1} parent=1 // pred_check
      _
    $region31: #{mlp_forward.1} parent=1 // pred_check_branch
      %585 = sbr.rel (0) target = $region33
    $region32: #{mlp_forward.1} parent=1 // pred_region
      %587 = vsyncadd [#allocation3], 0
      %s589 = sshll.u32 [#allocation2], 4
      %s590 = int_to_ptr.vmem [resolvable:$true] %s589
      %s591 = sshll.u32 %s7, 4
      %s592 = int_to_ptr.hbm [resolvable:$true] %s591
      %594 = dma.vmem_to_hbm [thread:$0]  %s590, 128, %s592, [#allocation3]
    $region33: #{mlp_forward.1} parent=1 // pred_fallthru
      _
    // Predicated region
    $region34: #{mlp_forward.1} parent=1 // pred_check
      _
    $region35: #{mlp_forward.1} parent=1 // pred_check_branch
      %596 = sbr.rel (0) target = $region37
    $region36: #{mlp_forward.1} parent=1 // pred_region
      %598 = dma.done [#allocation3], 128
    $region37: #{mlp_forward.1} parent=1 // pred_fallthru
      _
    %599 = vsyncpa [#allocation3], 1

</llo_original>
